<compile_context>
chip_gen: v5e
topology: v5e:2x2
jax: 0.10.0
libtpu: 0.0.40
codegen_flags: <defaults>
</compile_context>

<pallas_src>
import functools

import jax
import jax.numpy as jnp
from jax import lax
from jax.experimental import pallas as pl
from jax.experimental.pallas import tpu as pltpu

_LANE = 128


def _round_up(x, m):
    return (x + m - 1) // m * m


def _tpu_config():
    """Generation-dependent VMEM budget / tile sizes."""
    cap = None
    try:
        cap = getattr(pltpu.get_tpu_info(), "vmem_capacity_bytes", None)
    except Exception:
        cap = None
    if cap is None or cap <= 0:
        cap = 64 * 1024 * 1024            # unknown -> assume smallest (v7x-safe)
    big = cap > 96 * 1024 * 1024          # v5e / v6e class (128 MiB VMEM)
    return dict(
        vmem_limit=min(96 * 1024 * 1024, int(cap) * 3 // 4),
        tile_m=2048 if big else 1024,
        block_b=128 if big else 64,
        attn_block_b=64 if big else 32,
    )


# ---------------------------------------------------------------------------
# Kernel 1: fused fc1+relu+fc2+relu + LSTM input projections (fwd & bwd, with
# (b_ih + b_hh) folded in), row-tiled over the flattened [B*T, featdim] view.
# Output (bf16): gate pre-activations [rows, 8*Hp] = [i f g o]_fwd ++ [i f g o]_bwd.
# ---------------------------------------------------------------------------
def _mlp_gates_kernel(x_ref, w1_ref, b1_ref, w2_ref, b2_ref, wih_ref, bih_ref, o_ref):
    # TODO(synk): nn.Dropout()/LSTM dropout are identity at inference; training-mode dropout not implemented.
    h = jnp.dot(x_ref[...], w1_ref[...], preferred_element_type=jnp.float32) + b1_ref[...]
    h = jnp.maximum(h, 0.0)
    h = jnp.dot(h.astype(jnp.bfloat16), w2_ref[...],
                preferred_element_type=jnp.float32) + b2_ref[...]
    h = jnp.maximum(h, 0.0)
    g = jnp.dot(h.astype(jnp.bfloat16), wih_ref[...],
                preferred_element_type=jnp.float32) + bih_ref[...]
    o_ref[...] = g.astype(o_ref.dtype)


def mlp_gates_forward(x2d_bf16, w1, b1, w2, b2, wih, bih, cfg):
    n, f = x2d_bf16.shape
    g = wih.shape[1]
    tile_m = min(cfg["tile_m"], _round_up(n, 16))
    grid = (pl.cdiv(n, tile_m),)
    const = lambda i: (0, 0)
    return pl.pallas_call(
        _mlp_gates_kernel,
        out_shape=jax.ShapeDtypeStruct((n, g), jnp.bfloat16),
        grid_spec=pltpu.PrefetchScalarGridSpec(
            num_scalar_prefetch=0,
            grid=grid,
            in_specs=[
                pl.BlockSpec((tile_m, f), lambda i: (i, 0)),
                pl.BlockSpec(w1.shape, const),
                pl.BlockSpec(b1.shape, const),
                pl.BlockSpec(w2.shape, const),
                pl.BlockSpec(b2.shape, const),
                pl.BlockSpec(wih.shape, const),
                pl.BlockSpec(bih.shape, const),
            ],
            out_specs=pl.BlockSpec((tile_m, g), lambda i: (i, 0)),
        ),
        compiler_params=pltpu.CompilerParams(
            dimension_semantics=("parallel",),
            vmem_limit_bytes=cfg["vmem_limit"]),
    )(x2d_bf16, w1, b1, w2, b2, wih, bih)


# ---------------------------------------------------------------------------
# Kernel 2: bidirectional LSTM recurrence with packed-sequence length masking
# (positions t >= len[b] don't update state and emit 0, reproducing
# pack_padded_sequence + LSTM + pad_packed_sequence(pad=0)).
# gates already contain x@Wih + (b_ih+b_hh); only h@Whh remains serial.
# Both directions interleave in one fori_loop; each uses its own dense
# (Hp, 4*Hp) hidden projection (no block-diagonal zero FLOPs, no concat).
# ---------------------------------------------------------------------------
def _blstm_kernel(lens_ref, gates_ref, whh_f_ref, whh_b_ref, out_ref, g_sc, o_sc):
    bb, t_len, _ = gates_ref.shape
    hp = out_ref.shape[-1] // 2
    g4 = 4 * hp
    lens = lens_ref[...]                                  # (bb, 1) int32

    # Bulk bf16 -> f32 conversion once per block: HBM streams bf16, the serial
    # loop only touches 32-bit VMEM (no packed-dtype dynamic-sublane access).
    g_sc[...] = gates_ref[...].astype(jnp.float32)

    def lstm_update(g, c):
        # PyTorch gate order i, f, g, o ; each block 128-lane aligned.
        i = jax.nn.sigmoid(g[:, 0 * hp:1 * hp])
        f = jax.nn.sigmoid(g[:, 1 * hp:2 * hp])
        gg = jnp.tanh(g[:, 2 * hp:3 * hp])
        o = jax.nn.sigmoid(g[:, 3 * hp:4 * hp])
        c_new = f * c + i * gg
        h_new = o * jnp.tanh(c_new)
        return h_new, c_new

    def step(s, carry):
        h_f, c_f, h_b, c_b = carry
        tf = s
        tb = t_len - 1 - s

        g_hh_f = jnp.dot(h_f.astype(jnp.bfloat16), whh_f_ref[...],
                         preferred_element_type=jnp.float32)        # (bb, 4*hp)
        g_hh_b = jnp.dot(h_b.astype(jnp.bfloat16), whh_b_ref[...],
                         preferred_element_type=jnp.float32)

        g_f = g_sc[:, pl.ds(tf, 1), pl.ds(0, g4)].reshape(bb, g4) + g_hh_f
        g_b = g_sc[:, pl.ds(tb, 1), pl.ds(g4, g4)].reshape(bb, g4) + g_hh_b

        hf_new, cf_new = lstm_update(g_f, c_f)
        hb_new, cb_new = lstm_update(g_b, c_b)

        valid_f = tf < lens                               # packed-seq masks
        valid_b = tb < lens
        h_f = jnp.where(valid_f, hf_new, h_f)
        c_f = jnp.where(valid_f, cf_new, c_f)
        h_b = jnp.where(valid_b, hb_new, h_b)
        c_b = jnp.where(valid_b, cb_new, c_b)

        o_sc[:, pl.ds(tf, 1), pl.ds(0, hp)] = jnp.where(valid_f, hf_new, 0.0)[:, None, :]
        o_sc[:, pl.ds(tb, 1), pl.ds(hp, hp)] = jnp.where(valid_b, hb_new, 0.0)[:, None, :]
        return h_f, c_f, h_b, c_b

    zeros = jnp.zeros((bb, hp), jnp.float32)
    lax.fori_loop(0, t_len, step, (zeros, zeros, zeros, zeros), unroll=2)

    out_ref[...] = o_sc[...].astype(out_ref.dtype)        # lane-dense bf16 store


def blstm_forward(gates, lens_i32, whh_f, whh_b, cfg):
    b, t_len, g8 = gates.shape
    hp = whh_f.shape[0]
    # VMEM/row: gates (bf16 dbl-buf + f32 scratch) + out (bf16 dbl-buf + f32 scratch)
    per_row = t_len * hp * (8 * 8 + 2 * 8)
    bb_cap = max(8, int(cfg["vmem_limit"] * 0.6) // max(per_row, 1))
    bb_target = min(cfg["block_b"], bb_cap)
    bb = b if b <= bb_target else max(8, (bb_target // 8) * 8)
    grid = (pl.cdiv(b, bb),)
    return pl.pallas_call(
        _blstm_kernel,
        out_shape=jax.ShapeDtypeStruct((b, t_len, 2 * hp), jnp.bfloat16),
        grid_spec=pltpu.PrefetchScalarGridSpec(
            num_scalar_prefetch=0,
            grid=grid,
            in_specs=[
                pl.BlockSpec((bb, 1), lambda i: (i, 0)),
                pl.BlockSpec((bb, t_len, g8), lambda i: (i, 0, 0)),
                pl.BlockSpec(whh_f.shape, lambda i: (0, 0)),
                pl.BlockSpec(whh_b.shape, lambda i: (0, 0)),
            ],
            out_specs=pl.BlockSpec((bb, t_len, 2 * hp), lambda i: (i, 0, 0)),
            scratch_shapes=[
                pltpu.VMEM((bb, t_len, g8), jnp.float32),
                pltpu.VMEM((bb, t_len, 2 * hp), jnp.float32),
            ],
        ),
        compiler_params=pltpu.CompilerParams(
            dimension_semantics=("parallel",),
            vmem_limit_bytes=cfg["vmem_limit"]),
    )(lens_i32, gates, whh_f, whh_b)


# ---------------------------------------------------------------------------
# Kernel 3 (two tiled phases):
#   phase 1: scores = padded @ u, softmax over time (dim=1, padded positions
#            deliberately unmasked as in the original), accumulate the global
#            s[t] = sum_b alpha[b, t]     (cross-batch coupling of the original
#            torch.matmul(alpha, padded).sum(dim=1))
#   phase 2: pooled[b] = sum_t s[t] * padded[b, t, :]; fc3 + softmax
#            (output padded to 128 lanes; padded classes masked via b3 = -1e30)
# Padded lanes of p / u / w3 are exactly zero, so results match unpadded math.
# ---------------------------------------------------------------------------
def _attn_scores_kernel(p_ref, u_ref, s_ref, *, total_b):
    i = pl.program_id(0)
    bb = p_ref.shape[0]

    @pl.when(i == 0)
    def _():
        s_ref[...] = jnp.zeros_like(s_ref)

    p = p_ref[...].astype(jnp.float32)                    # (bb, T, 2*Hp)
    u = u_ref[...]                                        # (1, 2*Hp)
    scores = jnp.sum(p * u[:, None, :], axis=-1)          # (bb, T)
    m = jnp.max(scores, axis=1, keepdims=True)            # softmax over time
    e = jnp.exp(scores - m)
    alpha = e / jnp.sum(e, axis=1, keepdims=True)
    row = lax.broadcasted_iota(jnp.int32, (bb, 1), 0) + i * bb
    alpha = jnp.where(row < total_b, alpha, 0.0)          # mask partial batch block
    s_ref[...] += jnp.sum(alpha, axis=0, keepdims=True)   # (1, T)


def _attn_pool_fc3_kernel(s_ref, p_ref, w3_ref, b3_ref, o_ref):
    p = p_ref[...].astype(jnp.float32)                    # (bb, T, 2*Hp)
    s = s_ref[...]                                        # (1, T)
    pooled = jnp.sum(p * s[:, :, None], axis=1)           # (bb, 2*Hp)
    logits = jnp.dot(pooled.astype(jnp.bfloat16), w3_ref[...],
                     preferred_element_type=jnp.float32) + b3_ref[...]
    m = jnp.max(logits, axis=1, keepdims=True)
    e = jnp.exp(logits - m)                               # padded classes: exp(-1e30)=0
    o_ref[...] = e / jnp.sum(e, axis=1, keepdims=True)


def attn_head_forward(p, u, w3, b3, cfg):
    b, t_len, c2 = p.shape
    nout_pad = w3.shape[1]
    per_row = t_len * c2 * 2 * 2                          # bf16 p block, dbl-buffered
    bb_target = min(cfg["attn_block_b"],
                    max(8, int(cfg["vmem_limit"] * 0.5) // max(per_row, 1)))
    bb = b if b <= bb_target else max(8, (bb_target // 8) * 8)
    grid = (pl.cdiv(b, bb),)
    const2 = lambda i: (0, 0)

    s = pl.pallas_call(
        functools.partial(_attn_scores_kernel, total_b=b),
        out_shape=jax.ShapeDtypeStruct((1, t_len), jnp.float32),
        grid_spec=pltpu.PrefetchScalarGridSpec(
            num_scalar_prefetch=0,
            grid=grid,
            in_specs=[
                pl.BlockSpec((bb, t_len, c2), lambda i: (i, 0, 0)),
                pl.BlockSpec(u.shape, const2),
            ],
            out_specs=pl.BlockSpec((1, t_len), const2),   # accumulator across batch
        ),
        compiler_params=pltpu.CompilerParams(
            dimension_semantics=("arbitrary",),
            vmem_limit_bytes=cfg["vmem_limit"]),
    )(p, u)

    out_pad = pl.pallas_call(
        _attn_pool_fc3_kernel,
        out_shape=jax.ShapeDtypeStruct((b, nout_pad), jnp.float32),
        grid_spec=pltpu.PrefetchScalarGridSpec(
            num_scalar_prefetch=0,
            grid=grid,
            in_specs=[
                pl.BlockSpec(s.shape, const2),
                pl.BlockSpec((bb, t_len, c2), lambda i: (i, 0, 0)),
                pl.BlockSpec(w3.shape, const2),
                pl.BlockSpec(b3.shape, const2),
            ],
            out_specs=pl.BlockSpec((bb, nout_pad), lambda i: (i, 0)),
        ),
        compiler_params=pltpu.CompilerParams(
            dimension_semantics=("parallel",),
            vmem_limit_bytes=cfg["vmem_limit"]),
    )(s, p, w3, b3)
    return out_pad


# ---------------------------------------------------------------------------
# Parameter packing: 128-lane padding, gate-block padding, bf16 matmul weights.
# ---------------------------------------------------------------------------
def pack_params(lp, featdim, nhid, ncell, nout):
    np_ = _round_up(nhid, _LANE)
    hp = _round_up(ncell, _LANE)
    nout_pad = _round_up(nout, _LANE)

    def padto(a, shape):
        return jnp.pad(a, [(0, s - d) for s, d in zip(shape, a.shape)])

    def pad_gate_cols(w):
        # (rows, 4*ncell) -> (rows, 4*Hp): pad each gate block (i,f,g,o) to Hp lanes
        blocks = [padto(w[:, k * ncell:(k + 1) * ncell], (w.shape[0], hp)) for k in range(4)]
        return jnp.concatenate(blocks, axis=1)

    wih_f = pad_gate_cols(padto(lp["wih_f"], (np_, 4 * ncell)))
    wih_b = pad_gate_cols(padto(lp["wih_b"], (np_, 4 * ncell)))
    wih_all = jnp.concatenate([wih_f, wih_b], axis=1).astype(jnp.bfloat16)     # (Np, 8*Hp)

    b_f = pad_gate_cols(lp["b_f"].reshape(1, 4 * ncell))
    b_b = pad_gate_cols(lp["b_b"].reshape(1, 4 * ncell))
    bih_all = jnp.concatenate([b_f, b_b], axis=1).astype(jnp.float32)          # (1, 8*Hp)

    whh_f = pad_gate_cols(padto(lp["whh_f"], (hp, 4 * ncell))).astype(jnp.bfloat16)  # (Hp, 4*Hp)
    whh_b = pad_gate_cols(padto(lp["whh_b"], (hp, 4 * ncell))).astype(jnp.bfloat16)

    u_p = jnp.zeros((1, 2 * hp), jnp.float32)
    u_p = u_p.at[0, :ncell].set(lp["u"][:ncell])
    u_p = u_p.at[0, hp:hp + ncell].set(lp["u"][ncell:])

    w3_p = jnp.zeros((2 * hp, nout_pad), jnp.float32)
    w3_p = w3_p.at[:ncell, :nout].set(lp["w3"][:ncell])
    w3_p = w3_p.at[hp:hp + ncell, :nout].set(lp["w3"][ncell:])
    w3_p = w3_p.astype(jnp.bfloat16)

    b3_p = jnp.full((1, nout_pad), -1e30, jnp.float32)    # padded classes -> exp()=0
    b3_p = b3_p.at[0, :nout].set(lp["b3"])

    return dict(
        w1=padto(lp["w1"], (featdim, np_)).astype(jnp.bfloat16),
        b1=padto(lp["b1"].reshape(1, nhid), (1, np_)).astype(jnp.float32),
        w2=padto(lp["w2"], (np_, np_)).astype(jnp.bfloat16),
        b2=padto(lp["b2"].reshape(1, nhid), (1, np_)).astype(jnp.float32),
        wih=wih_all, bih=bih_all, whh_f=whh_f, whh_b=whh_b,
        u=u_p, w3=w3_p, b3=b3_p, nout=nout,
    )


# ---------------------------------------------------------------------------
# Full forward pass (glue in plain JAX)
# ---------------------------------------------------------------------------
def localatt_forward(x, lens_list, pp, cfg):
    b, t, f = x.shape
    tmax = int(max(lens_list))          # pad_packed_sequence truncates to max(lens)
    x = x[:, :tmax]
    x2d = x.reshape(b * tmax, f).astype(jnp.bfloat16)     # cast once in the wrapper
    gates = mlp_gates_forward(x2d, pp["w1"], pp["b1"], pp["w2"], pp["b2"],
                              pp["wih"], pp["bih"], cfg)
    gates = gates.reshape(b, tmax, -1)
    lens_i32 = jnp.asarray(lens_list, dtype=jnp.int32).reshape(b, 1)
    padded = blstm_forward(gates, lens_i32, pp["whh_f"], pp["whh_b"], cfg)
    out_pad = attn_head_forward(padded, pp["u"], pp["w3"], pp["b3"], cfg)
    return out_pad[:, :pp["nout"]]


# ---------------------------------------------------------------------------
# Pure-JAX reference (same math, same bf16 rounding points) for correctness
# ---------------------------------------------------------------------------
def reference_forward(x, lens_list, lp):
    def mm(a, w):
        return jnp.dot(a.astype(jnp.bfloat16), w.astype(jnp.bfloat16),
                       preferred_element_type=jnp.float32)

    def bf16_round(a):
        return a.astype(jnp.bfloat16).astype(jnp.float32)

    b, t, f = x.shape
    tmax = int(max(lens_list))
    x = x[:, :tmax]
    h = jnp.maximum(mm(x.reshape(b * tmax, f), lp["w1"]) + lp["b1"], 0.0)
    feats = jnp.maximum(mm(h, lp["w2"]) + lp["b2"], 0.0)
    lens = jnp.asarray(lens_list, dtype=jnp.int32)[:, None]
    hc = lp["whh_f"].shape[0]

    def lstm_dir(reverse, wih, whh, bias):
        gin = bf16_round(mm(feats, wih) + bias).reshape(b, tmax, 4 * hc)
        out = jnp.zeros((b, tmax, hc), jnp.float32)
        hh = jnp.zeros((b, hc), jnp.float32)
        cc = jnp.zeros((b, hc), jnp.float32)
        ts = range(tmax - 1, -1, -1) if reverse else range(tmax)
        for tt in ts:
            g = gin[:, tt] + mm(hh, whh)
            i = jax.nn.sigmoid(g[:, :hc]); fgt = jax.nn.sigmoid(g[:, hc:2 * hc])
            gg = jnp.tanh(g[:, 2 * hc:3 * hc]); o = jax.nn.sigmoid(g[:, 3 * hc:])
            cn = fgt * cc + i * gg
            hn = o * jnp.tanh(cn)
            valid = tt < lens
            hh = jnp.where(valid, hn, hh)
            cc = jnp.where(valid, cn, cc)
            out = out.at[:, tt].set(jnp.where(valid, hn, 0.0))
        return out

    p = bf16_round(jnp.concatenate(
        [lstm_dir(False, lp["wih_f"], lp["whh_f"], lp["b_f"]),
         lstm_dir(True, lp["wih_b"], lp["whh_b"], lp["b_b"])], axis=-1))
    scores = jnp.einsum("btc,c->bt", p, lp["u"])
    alpha = jax.nn.softmax(scores, axis=1)
    s = alpha.sum(0)
    pooled = jnp.einsum("t,btc->bc", s, p)
    logits = mm(pooled, lp["w3"]) + lp["b3"]
    return jax.nn.softmax(logits, axis=1)


if __name__ == "__main__":
    B, T = 2, 8
    featdim, nhid, ncell, nout = 16, 32, 16, 4
    lens_list = [8, 6]                  # decreasing, as required by pack_padded_sequence

    key = jax.random.PRNGKey(0)
    ks = jax.random.split(key, 9)

    def rn(k, shape, scale=0.1):
        return (scale * jax.random.normal(k, shape)).astype(jnp.float32)

    logical = dict(
        w1=rn(ks[0], (featdim, nhid)), b1=jnp.zeros((nhid,), jnp.float32),
        w2=rn(ks[1], (nhid, nhid)),    b2=jnp.zeros((nhid,), jnp.float32),
        wih_f=rn(ks[2], (nhid, 4 * ncell)), whh_f=rn(ks[3], (ncell, 4 * ncell)),
        b_f=jnp.zeros((4 * ncell,), jnp.float32),
        wih_b=rn(ks[4], (nhid, 4 * ncell)), whh_b=rn(ks[5], (ncell, 4 * ncell)),
        b_b=jnp.zeros((4 * ncell,), jnp.float32),
        # NOTE: __init__ sets u = zeros; a small deterministic random u exercises
        # the attention path non-trivially (shapes identical).
        u=rn(ks[6], (2 * ncell,)),
        w3=rn(ks[7], (2 * ncell, nout)), b3=jnp.zeros((nout,), jnp.float32),
    )
    packed = pack_params(logical, featdim, nhid, ncell, nout)
    cfg = _tpu_config()

    x = jax.random.normal(ks[8], (B, T, featdim), jnp.float32)

    out = jax.block_until_ready(localatt_forward(x, lens_list, packed, cfg))
    ref = reference_forward(x, lens_list, logical)

    assert out.shape == (B, nout)
    assert bool(jnp.all(jnp.isfinite(out)))
    assert bool(jnp.allclose(jnp.sum(out, axis=1), 1.0, atol=1e-5))
    assert bool(jnp.allclose(out, ref, atol=5e-3, rtol=5e-3)), (out, ref)
    print("KERNEL_OK")
</pallas_src>

<mosaic_0001>
module attributes {stable_mosaic.version = 11 : i64} {
  func.func @_mlp_gates_kernel(%arg0: i32, %arg1: memref<16x16xbf16, #tpu.memory_space<vmem>>, %arg2: memref<16x128xbf16, #tpu.memory_space<vmem>>, %arg3: memref<1x128xf32, #tpu.memory_space<vmem>>, %arg4: memref<128x128xbf16, #tpu.memory_space<vmem>>, %arg5: memref<1x128xf32, #tpu.memory_space<vmem>>, %arg6: memref<128x1024xbf16, #tpu.memory_space<vmem>>, %arg7: memref<1x1024xf32, #tpu.memory_space<vmem>>, %arg8: memref<16x1024xbf16, #tpu.memory_space<vmem>>) attributes {dimension_semantics = [#tpu.dimension_semantics<parallel>], iteration_bounds = array<i64: 1>, scalar_prefetch = 0 : i64, scratch_operands = 0 : i64, tpu.core_type = #tpu.core_type<tc>, window_params = [{transform_indices = @transform_0, window_bounds = array<i64: 16, 16>}, {pipeline_mode = #tpu.pipeline_mode<synchronous>, transform_indices = @transform_1, window_bounds = array<i64: 16, 128>}, {pipeline_mode = #tpu.pipeline_mode<synchronous>, transform_indices = @transform_2, window_bounds = array<i64: 1, 128>}, {pipeline_mode = #tpu.pipeline_mode<synchronous>, transform_indices = @transform_3, window_bounds = array<i64: 128, 128>}, {pipeline_mode = #tpu.pipeline_mode<synchronous>, transform_indices = @transform_4, window_bounds = array<i64: 1, 128>}, {pipeline_mode = #tpu.pipeline_mode<synchronous>, transform_indices = @transform_5, window_bounds = array<i64: 128, 1024>}, {pipeline_mode = #tpu.pipeline_mode<synchronous>, transform_indices = @transform_6, window_bounds = array<i64: 1, 1024>}, {transform_indices = @transform_7, window_bounds = array<i64: 16, 1024>}]} {
    %c0 = arith.constant 0 : index
    %c0_0 = arith.constant 0 : index
    %0 = vector.load %arg1[%c0, %c0_0] : memref<16x16xbf16, #tpu.memory_space<vmem>>, vector<16x16xbf16>
    %c0_1 = arith.constant 0 : index
    %c0_2 = arith.constant 0 : index
    %1 = vector.load %arg2[%c0_1, %c0_2] : memref<16x128xbf16, #tpu.memory_space<vmem>>, vector<16x128xbf16>
    %cst = arith.constant dense<0.000000e+00> : vector<16x128xf32>
    %2 = tpu.matmul %0, %1, %cst {dimension_numbers = #tpu.dot_dimension_numbers<[1], [0], [0], [1], [0, 0, 1, 1], [], []>} : vector<16x16xbf16>, vector<16x128xbf16>, vector<16x128xf32> -> vector<16x128xf32>
    %c0_3 = arith.constant 0 : index
    %c0_4 = arith.constant 0 : index
    %3 = vector.load %arg3[%c0_3, %c0_4] : memref<1x128xf32, #tpu.memory_space<vmem>>, vector<1x128xf32>
    %4 = vector.broadcast %3 : vector<1x128xf32> to vector<16x128xf32>
    %5 = arith.addf %2, %4 : vector<16x128xf32>
    %cst_5 = arith.constant 0.000000e+00 : f32
    %6 = vector.broadcast %cst_5 : f32 to vector<16x128xf32>
    %7 = arith.maximumf %5, %6 : vector<16x128xf32>
    %8 = arith.truncf %7 : vector<16x128xf32> to vector<16x128xbf16>
    %c0_6 = arith.constant 0 : index
    %c0_7 = arith.constant 0 : index
    %9 = vector.load %arg4[%c0_6, %c0_7] : memref<128x128xbf16, #tpu.memory_space<vmem>>, vector<128x128xbf16>
    %cst_8 = arith.constant dense<0.000000e+00> : vector<16x128xf32>
    %10 = tpu.matmul %8, %9, %cst_8 {dimension_numbers = #tpu.dot_dimension_numbers<[1], [0], [0], [1], [0, 0, 1, 1], [], []>} : vector<16x128xbf16>, vector<128x128xbf16>, vector<16x128xf32> -> vector<16x128xf32>
    %c0_9 = arith.constant 0 : index
    %c0_10 = arith.constant 0 : index
    %11 = vector.load %arg5[%c0_9, %c0_10] : memref<1x128xf32, #tpu.memory_space<vmem>>, vector<1x128xf32>
    %12 = vector.broadcast %11 : vector<1x128xf32> to vector<16x128xf32>
    %13 = arith.addf %10, %12 : vector<16x128xf32>
    %cst_11 = arith.constant 0.000000e+00 : f32
    %14 = vector.broadcast %cst_11 : f32 to vector<16x128xf32>
    %15 = arith.maximumf %13, %14 : vector<16x128xf32>
    %16 = arith.truncf %15 : vector<16x128xf32> to vector<16x128xbf16>
    %c0_12 = arith.constant 0 : index
    %c0_13 = arith.constant 0 : index
    %17 = vector.load %arg6[%c0_12, %c0_13] : memref<128x1024xbf16, #tpu.memory_space<vmem>>, vector<128x1024xbf16>
    %cst_14 = arith.constant dense<0.000000e+00> : vector<16x1024xf32>
    %18 = tpu.matmul %16, %17, %cst_14 {dimension_numbers = #tpu.dot_dimension_numbers<[1], [0], [0], [1], [0, 0, 1, 1], [], []>} : vector<16x128xbf16>, vector<128x1024xbf16>, vector<16x1024xf32> -> vector<16x1024xf32>
    %c0_15 = arith.constant 0 : index
    %c0_16 = arith.constant 0 : index
    %19 = vector.load %arg7[%c0_15, %c0_16] : memref<1x1024xf32, #tpu.memory_space<vmem>>, vector<1x1024xf32>
    %20 = vector.broadcast %19 : vector<1x1024xf32> to vector<16x1024xf32>
    %21 = arith.addf %18, %20 : vector<16x1024xf32>
    %22 = arith.truncf %21 : vector<16x1024xf32> to vector<16x1024xbf16>
    %c0_17 = arith.constant 0 : index
    %c0_18 = arith.constant 0 : index
    %23 = vector.load %arg8[%c0_17, %c0_18] : memref<16x1024xbf16, #tpu.memory_space<vmem>>, vector<16x1024xbf16>
    tpu.vector_store %arg8[%c0_17, %c0_18], %22 {strides = array<i32>} : memref<16x1024xbf16, #tpu.memory_space<vmem>>, vector<16x1024xbf16>,
    return
  }
  func.func @transform_0(%arg0: i32) -> (i32, i32) {
    %c0_i32 = arith.constant 0 : i32
    %c0_i32_0 = arith.constant 0 : i32
    return %arg0, %c0_i32 : i32, i32
  }
  func.func @transform_1(%arg0: i32) -> (i32, i32) {
    %c0_i32 = arith.constant 0 : i32
    %c0_i32_0 = arith.constant 0 : i32
    %c0_i32_1 = arith.constant 0 : i32
    return %c0_i32, %c0_i32_0 : i32, i32
  }
  func.func @transform_2(%arg0: i32) -> (i32, i32) {
    %c0_i32 = arith.constant 0 : i32
    %c0_i32_0 = arith.constant 0 : i32
    %c0_i32_1 = arith.constant 0 : i32
    return %c0_i32, %c0_i32_0 : i32, i32
  }
  func.func @transform_3(%arg0: i32) -> (i32, i32) {
    %c0_i32 = arith.constant 0 : i32
    %c0_i32_0 = arith.constant 0 : i32
    %c0_i32_1 = arith.constant 0 : i32
    return %c0_i32, %c0_i32_0 : i32, i32
  }
  func.func @transform_4(%arg0: i32) -> (i32, i32) {
    %c0_i32 = arith.constant 0 : i32
    %c0_i32_0 = arith.constant 0 : i32
    %c0_i32_1 = arith.constant 0 : i32
    return %c0_i32, %c0_i32_0 : i32, i32
  }
  func.func @transform_5(%arg0: i32) -> (i32, i32) {
    %c0_i32 = arith.constant 0 : i32
    %c0_i32_0 = arith.constant 0 : i32
    %c0_i32_1 = arith.constant 0 : i32
    return %c0_i32, %c0_i32_0 : i32, i32
  }
  func.func @transform_6(%arg0: i32) -> (i32, i32) {
    %c0_i32 = arith.constant 0 : i32
    %c0_i32_0 = arith.constant 0 : i32
    %c0_i32_1 = arith.constant 0 : i32
    return %c0_i32, %c0_i32_0 : i32, i32
  }
  func.func @transform_7(%arg0: i32) -> (i32, i32) {
    %c0_i32 = arith.constant 0 : i32
    %c0_i32_0 = arith.constant 0 : i32
    return %arg0, %c0_i32 : i32, i32
  }
}

</mosaic_0001>

<llo_original>
// kernel: tpu_custom_call.1
$region0: #{tpu_custom_call.1}
  #allocation0 [shape = 'u32[]', space=smem, size = 0x4, offset = 0x4, fixed_abs, tag = 'smem constant byte address 0x4 - core index']
  #allocation1 [shape = 'u32[72,128]{1,0:T(1,128)}', space=vmem, size = 0x9000, scoped, tag = 'internal scratch']
  %s0 = inlined_call_operand.hbm [shape: bf16[16,16], index: 0, kind: input, shape index: {}]
  %s1 = inlined_call_operand.hbm [shape: bf16[16,128], index: 1, kind: input, shape index: {}]
  %s2 = inlined_call_operand.vmem [shape: f32[1,128], index: 2, kind: input, shape index: {}]
  %s3 = inlined_call_operand.hbm [shape: bf16[128,128], index: 3, kind: input, shape index: {}]
  %s4 = inlined_call_operand.vmem [shape: f32[1,128], index: 4, kind: input, shape index: {}]
  %s5 = inlined_call_operand.hbm [shape: bf16[128,1024], index: 5, kind: input, shape index: {}]
  %s6 = inlined_call_operand.hbm [shape: f32[1,1024], index: 6, kind: input, shape index: {}]
  %s7 = inlined_call_operand.hbm [shape: bf16[16,1024], index: 7, kind: output, shape index: {}]
  %s8 = sld [smem:[#allocation0]]
  $region58: #{tpu_custom_call.1} parent=0
    _
  %s10 = ssub.s32 1, %s8
  %s11 = scalar_select 0, %s10, %s8
  $region1: #{tpu_custom_call.1} parent=0
    #allocation2 [shape = 'u8[4096]{0}', space=vmem, size = 0x1000, scoped, tag = 'input window, operand 0, single buffered']
    #allocation3 [shape = 's32[1]{0}', space=sflag, size = 0x4, scoped, tag = 'scoped memory for tpu_custom_call.1']
    #allocation4 [shape = 's32[1]{0}', space=sflag, size = 0x4, scoped, tag = 'scoped memory for tpu_custom_call.1']
    #allocation5 [shape = 'u8[4096]{0}', space=vmem, size = 0x1000, scoped, tag = 'input window, operand 1, single buffered']
    #allocation6 [shape = 's32[1]{0}', space=sflag, size = 0x4, scoped, tag = 'scoped memory for tpu_custom_call.1']
    #allocation7 [shape = 'u8[32768]{0}', space=vmem, size = 0x8000, scoped, tag = 'input window, operand 3, single buffered']
    #allocation8 [shape = 'u8[262144]{0}', space=vmem, size = 0x40000, scoped, tag = 'input window, operand 5, single buffered']
    #allocation9 [shape = 's32[1]{0}', space=sflag, size = 0x4, scoped, tag = 'scoped memory for tpu_custom_call.1']
    #allocation10 [shape = 'u8[4096]{0}', space=vmem, size = 0x1000, scoped, tag = 'input window, operand 6, single buffered']
    #allocation11 [shape = 'u8[32768]{0}', space=vmem, size = 0x8000, scoped, tag = 'output window, operand 0, single buffered']
    %12 = vsyncpa [#allocation3], 0
    %13 = vsyncpa [#allocation6], 0
    %14 = vsyncpa [#allocation9], 0
    %15 = vsyncpa [#allocation4], 0
    // Predicated region
    $region2: #{tpu_custom_call.1} parent=1 // pred_check
      _
    $region3: #{tpu_custom_call.1} parent=1 // pred_check_branch
      %17 = sbr.rel (0) target = $region5
    $region4: #{tpu_custom_call.1} parent=1 // pred_region
      %19 = vsyncadd [#allocation3], 0
      %s20 = sshll.u32 %s0, 4
      %s21 = int_to_ptr.hbm [resolvable:$true] %s20
      %s22 = sshll.u32 [#allocation2], 4
      %s23 = int_to_ptr.vmem [resolvable:$true] %s22
      %28 = dma.hbm_to_vmem [thread:$0]  %s21, 128, %s23, [#allocation3], 64, 64, 4
    $region5: #{tpu_custom_call.1} parent=1 // pred_fallthru
      _
    // Predicated region
    $region6: #{tpu_custom_call.1} parent=1 // pred_check
      _
    $region7: #{tpu_custom_call.1} parent=1 // pred_check_branch
      %30 = sbr.rel (0) target = $region9
    $region8: #{tpu_custom_call.1} parent=1 // pred_region
      %32 = vsyncadd [#allocation6], 0
      %s33 = sshll.u32 %s1, 4
      %s34 = int_to_ptr.hbm [resolvable:$true] %s33
      %s35 = sshll.u32 [#allocation5], 4
      %s36 = int_to_ptr.vmem [resolvable:$true] %s35
      %41 = dma.hbm_to_vmem [thread:$0]  %s34, 128, %s36, [#allocation6], 64, 64, 4
    $region9: #{tpu_custom_call.1} parent=1 // pred_fallthru
      _
    // Predicated region
    $region10: #{tpu_custom_call.1} parent=1 // pred_check
      _
    $region11: #{tpu_custom_call.1} parent=1 // pred_check_branch
      %43 = sbr.rel (0) target = $region13
    $region12: #{tpu_custom_call.1} parent=1 // pred_region
      _
    $region13: #{tpu_custom_call.1} parent=1 // pred_fallthru
      _
    // Predicated region
    $region14: #{tpu_custom_call.1} parent=1 // pred_check
      _
    $region15: #{tpu_custom_call.1} parent=1 // pred_check_branch
      %45 = sbr.rel (0) target = $region17
    $region16: #{tpu_custom_call.1} parent=1 // pred_region
      %47 = vsyncadd [#allocation6], 0
      %s48 = sshll.u32 %s3, 4
      %s49 = int_to_ptr.hbm [resolvable:$true] %s48
      %s50 = sshll.u32 [#allocation7], 4
      %s51 = int_to_ptr.vmem [resolvable:$true] %s50
      %56 = dma.hbm_to_vmem [thread:$0]  %s49, 1024, %s51, [#allocation6], 64, 64, 4
    $region17: #{tpu_custom_call.1} parent=1 // pred_fallthru
      _
    // Predicated region
    $region18: #{tpu_custom_call.1} parent=1 // pred_check
      _
    $region19: #{tpu_custom_call.1} parent=1 // pred_check_branch
      %58 = sbr.rel (0) target = $region21
    $region20: #{tpu_custom_call.1} parent=1 // pred_region
      _
    $region21: #{tpu_custom_call.1} parent=1 // pred_fallthru
      _
    // Predicated region
    $region22: #{tpu_custom_call.1} parent=1 // pred_check
      _
    $region23: #{tpu_custom_call.1} parent=1 // pred_check_branch
      %60 = sbr.rel (0) target = $region25
    $region24: #{tpu_custom_call.1} parent=1 // pred_region
      %62 = vsyncadd [#allocation9], 0
      %s63 = sshll.u32 %s5, 4
      %s64 = int_to_ptr.hbm [resolvable:$true] %s63
      %s65 = sshll.u32 [#allocation8], 4
      %s66 = int_to_ptr.vmem [resolvable:$true] %s65
      %71 = dma.hbm_to_vmem [thread:$0]  %s64, 8192, %s66, [#allocation9], 512, 512, 32
    $region25: #{tpu_custom_call.1} parent=1 // pred_fallthru
      _
    // Predicated region
    $region26: #{tpu_custom_call.1} parent=1 // pred_check
      _
    $region27: #{tpu_custom_call.1} parent=1 // pred_check_branch
      %73 = sbr.rel (0) target = $region29
    $region28: #{tpu_custom_call.1} parent=1 // pred_region
      %75 = vsyncadd [#allocation9], 0
      %s77 = sshll.u32 %s6, 4
      %s78 = int_to_ptr.hbm [resolvable:$true] %s77
      %s79 = sshll.u32 [#allocation10], 4
      %s80 = int_to_ptr.vmem [resolvable:$true] %s79
      %82 = dma.hbm_to_vmem [thread:$0]  %s78, 128, %s80, [#allocation9]
    $region29: #{tpu_custom_call.1} parent=1 // pred_fallthru
      _
    // Predicated region
    $region30: #{tpu_custom_call.1} parent=1 // pred_check
      _
    $region31: #{tpu_custom_call.1} parent=1 // pred_check_branch
      %84 = sbr.rel (0) target = $region33
    $region32: #{tpu_custom_call.1} parent=1 // pred_region
      %86 = dma.done [#allocation3], 128
    $region33: #{tpu_custom_call.1} parent=1 // pred_fallthru
      _
    // Predicated region
    $region34: #{tpu_custom_call.1} parent=1 // pred_check
      _
    $region35: #{tpu_custom_call.1} parent=1 // pred_check_branch
      %88 = sbr.rel (0) target = $region37
    $region36: #{tpu_custom_call.1} parent=1 // pred_region
      %90 = dma.done [#allocation6], 128
    $region37: #{tpu_custom_call.1} parent=1 // pred_fallthru
      _
    // Predicated region
    $region38: #{tpu_custom_call.1} parent=1 // pred_check
      _
    $region39: #{tpu_custom_call.1} parent=1 // pred_check_branch
      %92 = sbr.rel (0) target = $region41
    $region40: #{tpu_custom_call.1} parent=1 // pred_region
      %94 = dma.done [#allocation6], 1024
    $region41: #{tpu_custom_call.1} parent=1 // pred_fallthru
      _
    // Predicated region
    $region42: #{tpu_custom_call.1} parent=1 // pred_check
      _
    $region43: #{tpu_custom_call.1} parent=1 // pred_check_branch
      %96 = sbr.rel (0) target = $region45
    $region44: #{tpu_custom_call.1} parent=1 // pred_region
      %98 = dma.done [#allocation9], 8192
    $region45: #{tpu_custom_call.1} parent=1 // pred_fallthru
      _
    // Predicated region
    $region46: #{tpu_custom_call.1} parent=1 // pred_check
      _
    $region47: #{tpu_custom_call.1} parent=1 // pred_check_branch
      %100 = sbr.rel (0) target = $region49
    $region48: #{tpu_custom_call.1} parent=1 // pred_region
      %102 = dma.done [#allocation9], 128
    $region49: #{tpu_custom_call.1} parent=1 // pred_fallthru
      _
    %v104 = vld [vmem:[#allocation2] sm:$0xf]
    %v105 = vld [vmem:[#allocation2 + $0x4] sm:$0xf]
    %v106 = vld [vmem:[#allocation5] sm:$0xf]
    %v107 = vld [vmem:[#allocation5 + $0x4] sm:$0xf]
    %v108 = vld [vmem:[%s2] sm:$0x1]
    %v110 = vperm.slane %v108, 0
    %v114 = vunpack.c.l.b16 %v104
    %v115 = vunpack.c.l.b16 %v105
    %v116 = vpack.c.b16 %v115, %v114
    %v119 = vunpack.c.l.b16 %v106
    %v120 = vunpack.c.l.b16 %v107
    %v121 = vpack.c.b16 %v120, %v119
    %vm123 = vcmask 130048
    %v125 = vsel %vm123, %v116, 0
    %127 = vmatpush.bf16.msra.mxu0 0
    %128 = vmatpush.bf16.msra.mxu0 0
    %129 = vmatpush.bf16.msra.mxu0 0
    %130 = vmatpush.bf16.msra.mxu0 0
    %131 = vmatpush.bf16.msra.mxu0 0
    %132 = vmatpush.bf16.msra.mxu0 0
    %133 = vmatpush.bf16.msra.mxu0 0
    %134 = vmatpush.bf16.msra.mxu0 %v121
    %135 = vmatmul.bf16.gmra.mxu0 %v125
    %v136 = vpop.f32.mrf.mxu0
    %v137 = vadd.f32 %v110, %v136
    %v138 = vpop.f32.mrf.mxu0
    %v139 = vadd.f32 %v110, %v138
    %140 = vdwg.mxu0
    %v141 = vmax.f32 %v137, 0.0
    %v142 = vmax.f32 %v139, 0.0
    %v143 = vpack.c.bf16 %v142, %v141
    %v144 = vld [vmem:[#allocation7] sm:$0xf]
    %v145 = vld [vmem:[#allocation7 + $0x4] sm:$0xf]
    %v146 = vld [vmem:[#allocation7 + $0x8] sm:$0xf]
    %v147 = vld [vmem:[#allocation7 + $0xc] sm:$0xf]
    %v148 = vld [vmem:[#allocation7 + $0x10] sm:$0xf]
    %v149 = vld [vmem:[#allocation7 + $0x14] sm:$0xf]
    %v150 = vld [vmem:[#allocation7 + $0x18] sm:$0xf]
    %v151 = vld [vmem:[#allocation7 + $0x1c] sm:$0xf]
    %v152 = vld [vmem:[#allocation7 + $0x20] sm:$0xf]
    %v153 = vld [vmem:[#allocation7 + $0x24] sm:$0xf]
    %v154 = vld [vmem:[#allocation7 + $0x28] sm:$0xf]
    %v155 = vld [vmem:[#allocation7 + $0x2c] sm:$0xf]
    %v156 = vld [vmem:[#allocation7 + $0x30] sm:$0xf]
    %v157 = vld [vmem:[#allocation7 + $0x34] sm:$0xf]
    %v158 = vld [vmem:[#allocation7 + $0x38] sm:$0xf]
    %v159 = vld [vmem:[#allocation7 + $0x3c] sm:$0xf]
    %v160 = vld [vmem:[%s4] sm:$0x1]
    %v162 = vperm.slane %v160, 0
    %v180 = vunpack.c.l.b16 %v144
    %v181 = vunpack.c.l.b16 %v145
    %v182 = vunpack.c.l.b16 %v146
    %v183 = vunpack.c.l.b16 %v147
    %v184 = vunpack.c.l.b16 %v148
    %v185 = vunpack.c.l.b16 %v149
    %v186 = vunpack.c.l.b16 %v150
    %v187 = vunpack.c.l.b16 %v151
    %v188 = vunpack.c.l.b16 %v152
    %v189 = vunpack.c.l.b16 %v153
    %v190 = vunpack.c.l.b16 %v154
    %v191 = vunpack.c.l.b16 %v155
    %v192 = vunpack.c.l.b16 %v156
    %v193 = vunpack.c.l.b16 %v157
    %v194 = vunpack.c.l.b16 %v158
    %v195 = vunpack.c.l.b16 %v159
    %v196 = vpack.c.b16 %v181, %v180
    %v197 = vpack.c.b16 %v183, %v182
    %v198 = vpack.c.b16 %v185, %v184
    %v199 = vpack.c.b16 %v187, %v186
    %v200 = vpack.c.b16 %v189, %v188
    %v201 = vpack.c.b16 %v191, %v190
    %v202 = vpack.c.b16 %v193, %v192
    %v203 = vpack.c.b16 %v195, %v194
    %212 = vmatpush.bf16.msra.mxu0 %v203
    %213 = vmatpush.bf16.msra.mxu0 %v202
    %214 = vmatpush.bf16.msra.mxu0 %v201
    %215 = vmatpush.bf16.msra.mxu0 %v200
    %216 = vmatpush.bf16.msra.mxu0 %v199
    %217 = vmatpush.bf16.msra.mxu0 %v198
    %218 = vmatpush.bf16.msra.mxu0 %v197
    %219 = vmatpush.bf16.msra.mxu0 %v196
    %220 = vmatmul.bf16.gmra.mxu0 %v143
    %v221 = vpop.f32.mrf.mxu0
    %v222 = vadd.f32 %v162, %v221
    %v223 = vpop.f32.mrf.mxu0
    %v224 = vadd.f32 %v162, %v223
    %225 = vdwg.mxu0
    %v226 = vmax.f32 %v222, 0.0
    %v227 = vmax.f32 %v224, 0.0
    %v228 = vpack.c.bf16 %v227, %v226
    %v229 = vld [vmem:[#allocation8] sm:$0xff]
    %v230 = vld [vmem:[#allocation8 + $0x8] sm:$0xff]
    %v231 = vld [vmem:[#allocation8 + $0x10] sm:$0xff]
    %v232 = vld [vmem:[#allocation8 + $0x18] sm:$0xff]
    %v233 = vld [vmem:[#allocation8 + $0x20] sm:$0xff]
    %v234 = vld [vmem:[#allocation8 + $0x28] sm:$0xff]
    %v235 = vld [vmem:[#allocation8 + $0x30] sm:$0xff]
    %v236 = vld [vmem:[#allocation8 + $0x38] sm:$0xff]
    %v237 = vld [vmem:[#allocation8 + $0x40] sm:$0xff]
    %v238 = vld [vmem:[#allocation8 + $0x48] sm:$0xff]
    %v239 = vld [vmem:[#allocation8 + $0x50] sm:$0xff]
    %v240 = vld [vmem:[#allocation8 + $0x58] sm:$0xff]
    %v241 = vld [vmem:[#allocation8 + $0x60] sm:$0xff]
    %v242 = vld [vmem:[#allocation8 + $0x68] sm:$0xff]
    %v243 = vld [vmem:[#allocation8 + $0x70] sm:$0xff]
    %v244 = vld [vmem:[#allocation8 + $0x78] sm:$0xff]
    %v245 = vld [vmem:[#allocation8 + $0x80] sm:$0xff]
    %v246 = vld [vmem:[#allocation8 + $0x88] sm:$0xff]
    %v247 = vld [vmem:[#allocation8 + $0x90] sm:$0xff]
    %v248 = vld [vmem:[#allocation8 + $0x98] sm:$0xff]
    %v249 = vld [vmem:[#allocation8 + $0xa0] sm:$0xff]
    %v250 = vld [vmem:[#allocation8 + $0xa8] sm:$0xff]
    %v251 = vld [vmem:[#allocation8 + $0xb0] sm:$0xff]
    %v252 = vld [vmem:[#allocation8 + $0xb8] sm:$0xff]
    %v253 = vld [vmem:[#allocation8 + $0xc0] sm:$0xff]
    %v254 = vld [vmem:[#allocation8 + $0xc8] sm:$0xff]
    %v255 = vld [vmem:[#allocation8 + $0xd0] sm:$0xff]
    %v256 = vld [vmem:[#allocation8 + $0xd8] sm:$0xff]
    %v257 = vld [vmem:[#allocation8 + $0xe0] sm:$0xff]
    %v258 = vld [vmem:[#allocation8 + $0xe8] sm:$0xff]
    %v259 = vld [vmem:[#allocation8 + $0xf0] sm:$0xff]
    %v260 = vld [vmem:[#allocation8 + $0xf8] sm:$0xff]
    %v261 = vld [vmem:[#allocation8 + $0x100] sm:$0xff]
    %v262 = vld [vmem:[#allocation8 + $0x108] sm:$0xff]
    %v263 = vld [vmem:[#allocation8 + $0x110] sm:$0xff]
    %v264 = vld [vmem:[#allocation8 + $0x118] sm:$0xff]
    %v265 = vld [vmem:[#allocation8 + $0x120] sm:$0xff]
    %v266 = vld [vmem:[#allocation8 + $0x128] sm:$0xff]
    %v267 = vld [vmem:[#allocation8 + $0x130] sm:$0xff]
    %v268 = vld [vmem:[#allocation8 + $0x138] sm:$0xff]
    %v269 = vld [vmem:[#allocation8 + $0x140] sm:$0xff]
    %v270 = vld [vmem:[#allocation8 + $0x148] sm:$0xff]
    %v271 = vld [vmem:[#allocation8 + $0x150] sm:$0xff]
    %v272 = vld [vmem:[#allocation8 + $0x158] sm:$0xff]
    %v273 = vld [vmem:[#allocation8 + $0x160] sm:$0xff]
    %v274 = vld [vmem:[#allocation8 + $0x168] sm:$0xff]
    %v275 = vld [vmem:[#allocation8 + $0x170] sm:$0xff]
    %v276 = vld [vmem:[#allocation8 + $0x178] sm:$0xff]
    %v277 = vld [vmem:[#allocation8 + $0x180] sm:$0xff]
    %v278 = vld [vmem:[#allocation8 + $0x188] sm:$0xff]
    %v279 = vld [vmem:[#allocation8 + $0x190] sm:$0xff]
    %v280 = vld [vmem:[#allocation8 + $0x198] sm:$0xff]
    %v281 = vld [vmem:[#allocation8 + $0x1a0] sm:$0xff]
    %v282 = vld [vmem:[#allocation8 + $0x1a8] sm:$0xff]
    %v283 = vld [vmem:[#allocation8 + $0x1b0] sm:$0xff]
    %v284 = vld [vmem:[#allocation8 + $0x1b8] sm:$0xff]
    %v285 = vld [vmem:[#allocation8 + $0x1c0] sm:$0xff]
    %v286 = vld [vmem:[#allocation8 + $0x1c8] sm:$0xff]
    %v287 = vld [vmem:[#allocation8 + $0x1d0] sm:$0xff]
    %v288 = vld [vmem:[#allocation8 + $0x1d8] sm:$0xff]
    %v289 = vld [vmem:[#allocation8 + $0x1e0] sm:$0xff]
    %v290 = vld [vmem:[#allocation8 + $0x1e8] sm:$0xff]
    %v291 = vld [vmem:[#allocation8 + $0x1f0] sm:$0xff]
    %v292 = vld [vmem:[#allocation8 + $0x1f8] sm:$0xff]
    %v293 = vld [vmem:[#allocation10] sm:$0xff]
    %v295 = vperm.slane %v293, 0
    %v296 = vperm.slane %v293, 1
    %v297 = vperm.slane %v293, 2
    %v298 = vperm.slane %v293, 3
    %v299 = vperm.slane %v293, 4
    %v300 = vperm.slane %v293, 5
    %v301 = vperm.slane %v293, 6
    %v302 = vperm.slane %v293, 7
    %v375 = vunpack.c.l.b16 %v229
    %v376 = vunpack.c.h.b16 %v229
    %v377 = vunpack.c.l.b16 %v230
    %v378 = vunpack.c.h.b16 %v230
    %v379 = vunpack.c.l.b16 %v231
    %v380 = vunpack.c.h.b16 %v231
    %v381 = vunpack.c.l.b16 %v232
    %v382 = vunpack.c.h.b16 %v232
    %v383 = vunpack.c.l.b16 %v233
    %v384 = vunpack.c.h.b16 %v233
    %v385 = vunpack.c.l.b16 %v234
    %v386 = vunpack.c.h.b16 %v234
    %v387 = vunpack.c.l.b16 %v235
    %v388 = vunpack.c.h.b16 %v235
    %v389 = vunpack.c.l.b16 %v236
    %v390 = vunpack.c.h.b16 %v236
    %v391 = vunpack.c.l.b16 %v237
    %v392 = vunpack.c.h.b16 %v237
    %v393 = vunpack.c.l.b16 %v238
    %v394 = vunpack.c.h.b16 %v238
    %v395 = vunpack.c.l.b16 %v239
    %v396 = vunpack.c.h.b16 %v239
    %v397 = vunpack.c.l.b16 %v240
    %v398 = vunpack.c.h.b16 %v240
    %v399 = vunpack.c.l.b16 %v241
    %v400 = vunpack.c.h.b16 %v241
    %v401 = vunpack.c.l.b16 %v242
    %v402 = vunpack.c.h.b16 %v242
    %v403 = vunpack.c.l.b16 %v243
    %v404 = vunpack.c.h.b16 %v243
    %v405 = vunpack.c.l.b16 %v244
    %v406 = vunpack.c.h.b16 %v244
    %v407 = vunpack.c.l.b16 %v245
    %v408 = vunpack.c.h.b16 %v245
    %v409 = vunpack.c.l.b16 %v246
    %v410 = vunpack.c.h.b16 %v246
    %v411 = vunpack.c.l.b16 %v247
    %v412 = vunpack.c.h.b16 %v247
    %v413 = vunpack.c.l.b16 %v248
    %v414 = vunpack.c.h.b16 %v248
    %v415 = vunpack.c.l.b16 %v249
    %v416 = vunpack.c.h.b16 %v249
    %v417 = vunpack.c.l.b16 %v250
    %v418 = vunpack.c.h.b16 %v250
    %v419 = vunpack.c.l.b16 %v251
    %v420 = vunpack.c.h.b16 %v251
    %v421 = vunpack.c.l.b16 %v252
    %v422 = vunpack.c.h.b16 %v252
    %v423 = vunpack.c.l.b16 %v253
    %v424 = vunpack.c.h.b16 %v253
    %v425 = vunpack.c.l.b16 %v254
    %v426 = vunpack.c.h.b16 %v254
    %v427 = vunpack.c.l.b16 %v255
    %v428 = vunpack.c.h.b16 %v255
    %v429 = vunpack.c.l.b16 %v256
    %v430 = vunpack.c.h.b16 %v256
    %v431 = vunpack.c.l.b16 %v257
    %v432 = vunpack.c.h.b16 %v257
    %v433 = vunpack.c.l.b16 %v258
    %v434 = vunpack.c.h.b16 %v258
    %v435 = vunpack.c.l.b16 %v259
    %v436 = vunpack.c.h.b16 %v259
    %v437 = vunpack.c.l.b16 %v260
    %v438 = vunpack.c.h.b16 %v260
    %v439 = vunpack.c.l.b16 %v261
    %v440 = vunpack.c.h.b16 %v261
    %v441 = vunpack.c.l.b16 %v262
    %v442 = vunpack.c.h.b16 %v262
    %v443 = vunpack.c.l.b16 %v263
    %v444 = vunpack.c.h.b16 %v263
    %v445 = vunpack.c.l.b16 %v264
    %v446 = vunpack.c.h.b16 %v264
    %v447 = vunpack.c.l.b16 %v265
    %v448 = vunpack.c.h.b16 %v265
    %v449 = vunpack.c.l.b16 %v266
    %v450 = vunpack.c.h.b16 %v266
    %v451 = vunpack.c.l.b16 %v267
    %v452 = vunpack.c.h.b16 %v267
    %v453 = vunpack.c.l.b16 %v268
    %v454 = vunpack.c.h.b16 %v268
    %v455 = vunpack.c.l.b16 %v269
    %v456 = vunpack.c.h.b16 %v269
    %v457 = vunpack.c.l.b16 %v270
    %v458 = vunpack.c.h.b16 %v270
    %v459 = vunpack.c.l.b16 %v271
    %v460 = vunpack.c.h.b16 %v271
    %v461 = vunpack.c.l.b16 %v272
    %v462 = vunpack.c.h.b16 %v272
    %v463 = vunpack.c.l.b16 %v273
    %v464 = vunpack.c.h.b16 %v273
    %v465 = vunpack.c.l.b16 %v274
    %v466 = vunpack.c.h.b16 %v274
    %v467 = vunpack.c.l.b16 %v275
    %v468 = vunpack.c.h.b16 %v275
    %v469 = vunpack.c.l.b16 %v276
    %v470 = vunpack.c.h.b16 %v276
    %v471 = vunpack.c.l.b16 %v277
    %v472 = vunpack.c.h.b16 %v277
    %v473 = vunpack.c.l.b16 %v278
    %v474 = vunpack.c.h.b16 %v278
    %v475 = vunpack.c.l.b16 %v279
    %v476 = vunpack.c.h.b16 %v279
    %v477 = vunpack.c.l.b16 %v280
    %v478 = vunpack.c.h.b16 %v280
    %v479 = vunpack.c.l.b16 %v281
    %v480 = vunpack.c.h.b16 %v281
    %v481 = vunpack.c.l.b16 %v282
    %v482 = vunpack.c.h.b16 %v282
    %v483 = vunpack.c.l.b16 %v283
    %v484 = vunpack.c.h.b16 %v283
    %v485 = vunpack.c.l.b16 %v284
    %v486 = vunpack.c.h.b16 %v284
    %v487 = vunpack.c.l.b16 %v285
    %v488 = vunpack.c.h.b16 %v285
    %v489 = vunpack.c.l.b16 %v286
    %v490 = vunpack.c.h.b16 %v286
    %v491 = vunpack.c.l.b16 %v287
    %v492 = vunpack.c.h.b16 %v287
    %v493 = vunpack.c.l.b16 %v288
    %v494 = vunpack.c.h.b16 %v288
    %v495 = vunpack.c.l.b16 %v289
    %v496 = vunpack.c.h.b16 %v289
    %v497 = vunpack.c.l.b16 %v290
    %v498 = vunpack.c.h.b16 %v290
    %v499 = vunpack.c.l.b16 %v291
    %v500 = vunpack.c.h.b16 %v291
    %v501 = vunpack.c.l.b16 %v292
    %v502 = vunpack.c.h.b16 %v292
    %v503 = vpack.c.b16 %v383, %v375
    %v504 = vpack.c.b16 %v384, %v376
    %v505 = vpack.c.b16 %v385, %v377
    %v506 = vpack.c.b16 %v386, %v378
    %v507 = vpack.c.b16 %v387, %v379
    %v508 = vpack.c.b16 %v388, %v380
    %v509 = vpack.c.b16 %v389, %v381
    %v510 = vpack.c.b16 %v390, %v382
    %v511 = vpack.c.b16 %v399, %v391
    %v512 = vpack.c.b16 %v400, %v392
    %v513 = vpack.c.b16 %v401, %v393
    %v514 = vpack.c.b16 %v402, %v394
    %v515 = vpack.c.b16 %v403, %v395
    %v516 = vpack.c.b16 %v404, %v396
    %v517 = vpack.c.b16 %v405, %v397
    %v518 = vpack.c.b16 %v406, %v398
    %v519 = vpack.c.b16 %v415, %v407
    %v520 = vpack.c.b16 %v416, %v408
    %v521 = vpack.c.b16 %v417, %v409
    %v522 = vpack.c.b16 %v418, %v410
    %v523 = vpack.c.b16 %v419, %v411
    %v524 = vpack.c.b16 %v420, %v412
    %v525 = vpack.c.b16 %v421, %v413
    %v526 = vpack.c.b16 %v422, %v414
    %v527 = vpack.c.b16 %v431, %v423
    %v528 = vpack.c.b16 %v432, %v424
    %v529 = vpack.c.b16 %v433, %v425
    %v530 = vpack.c.b16 %v434, %v426
    %v531 = vpack.c.b16 %v435, %v427
    %v532 = vpack.c.b16 %v436, %v428
    %v533 = vpack.c.b16 %v437, %v429
    %v534 = vpack.c.b16 %v438, %v430
    %v535 = vpack.c.b16 %v447, %v439
    %v536 = vpack.c.b16 %v448, %v440
    %v537 = vpack.c.b16 %v449, %v441
    %v538 = vpack.c.b16 %v450, %v442
    %v539 = vpack.c.b16 %v451, %v443
    %v540 = vpack.c.b16 %v452, %v444
    %v541 = vpack.c.b16 %v453, %v445
    %v542 = vpack.c.b16 %v454, %v446
    %v543 = vpack.c.b16 %v463, %v455
    %v544 = vpack.c.b16 %v464, %v456
    %v545 = vpack.c.b16 %v465, %v457
    %v546 = vpack.c.b16 %v466, %v458
    %v547 = vpack.c.b16 %v467, %v459
    %v548 = vpack.c.b16 %v468, %v460
    %v549 = vpack.c.b16 %v469, %v461
    %v550 = vpack.c.b16 %v470, %v462
    %v551 = vpack.c.b16 %v479, %v471
    %v552 = vpack.c.b16 %v480, %v472
    %v553 = vpack.c.b16 %v481, %v473
    %v554 = vpack.c.b16 %v482, %v474
    %v555 = vpack.c.b16 %v483, %v475
    %v556 = vpack.c.b16 %v484, %v476
    %v557 = vpack.c.b16 %v485, %v477
    %v558 = vpack.c.b16 %v486, %v478
    %v559 = vpack.c.b16 %v495, %v487
    %v560 = vpack.c.b16 %v496, %v488
    %v561 = vpack.c.b16 %v497, %v489
    %v562 = vpack.c.b16 %v498, %v490
    %v563 = vpack.c.b16 %v499, %v491
    %v564 = vpack.c.b16 %v500, %v492
    %v565 = vpack.c.b16 %v501, %v493
    %v566 = vpack.c.b16 %v502, %v494
    %631 = vmatpush.bf16.msra.mxu0 %v559
    %632 = vmatpush.bf16.msra.mxu0 %v551
    %633 = vmatpush.bf16.msra.mxu0 %v543
    %634 = vmatpush.bf16.msra.mxu0 %v535
    %635 = vmatpush.bf16.msra.mxu0 %v527
    %636 = vmatpush.bf16.msra.mxu0 %v519
    %637 = vmatpush.bf16.msra.mxu0 %v511
    %638 = vmatpush.bf16.msra.mxu0 %v503
    %639 = vmatmul.bf16.gmra.mxu0 %v228
    %v640 = vpop.f32.mrf.mxu0
    %v641 = vadd.f32 %v295, %v640
    %v642 = vpop.f32.mrf.mxu0
    %v643 = vadd.f32 %v295, %v642
    %644 = vdwg.mxu0
    %645 = vmatpush.bf16.msra.mxu0 %v560
    %646 = vmatpush.bf16.msra.mxu0 %v552
    %647 = vmatpush.bf16.msra.mxu0 %v544
    %648 = vmatpush.bf16.msra.mxu0 %v536
    %649 = vmatpush.bf16.msra.mxu0 %v528
    %650 = vmatpush.bf16.msra.mxu0 %v520
    %651 = vmatpush.bf16.msra.mxu0 %v512
    %652 = vmatpush.bf16.msra.mxu0 %v504
    %653 = vmatmul.bf16.gmra.mxu0 %v228
    %v654 = vpop.f32.mrf.mxu0
    %v655 = vadd.f32 %v296, %v654
    %v656 = vpop.f32.mrf.mxu0
    %v657 = vadd.f32 %v296, %v656
    %658 = vdwg.mxu0
    %659 = vmatpush.bf16.msra.mxu0 %v561
    %660 = vmatpush.bf16.msra.mxu0 %v553
    %661 = vmatpush.bf16.msra.mxu0 %v545
    %662 = vmatpush.bf16.msra.mxu0 %v537
    %663 = vmatpush.bf16.msra.mxu0 %v529
    %664 = vmatpush.bf16.msra.mxu0 %v521
    %665 = vmatpush.bf16.msra.mxu0 %v513
    %666 = vmatpush.bf16.msra.mxu0 %v505
    %667 = vmatmul.bf16.gmra.mxu0 %v228
    %v668 = vpop.f32.mrf.mxu0
    %v669 = vadd.f32 %v297, %v668
    %v670 = vpop.f32.mrf.mxu0
    %v671 = vadd.f32 %v297, %v670
    %672 = vdwg.mxu0
    %673 = vmatpush.bf16.msra.mxu0 %v562
    %674 = vmatpush.bf16.msra.mxu0 %v554
    %675 = vmatpush.bf16.msra.mxu0 %v546
    %676 = vmatpush.bf16.msra.mxu0 %v538
    %677 = vmatpush.bf16.msra.mxu0 %v530
    %678 = vmatpush.bf16.msra.mxu0 %v522
    %679 = vmatpush.bf16.msra.mxu0 %v514
    %680 = vmatpush.bf16.msra.mxu0 %v506
    %681 = vmatmul.bf16.gmra.mxu0 %v228
    %v682 = vpop.f32.mrf.mxu0
    %v683 = vadd.f32 %v298, %v682
    %v684 = vpop.f32.mrf.mxu0
    %v685 = vadd.f32 %v298, %v684
    %686 = vdwg.mxu0
    %687 = vmatpush.bf16.msra.mxu0 %v563
    %688 = vmatpush.bf16.msra.mxu0 %v555
    %689 = vmatpush.bf16.msra.mxu0 %v547
    %690 = vmatpush.bf16.msra.mxu0 %v539
    %691 = vmatpush.bf16.msra.mxu0 %v531
    %692 = vmatpush.bf16.msra.mxu0 %v523
    %693 = vmatpush.bf16.msra.mxu0 %v515
    %694 = vmatpush.bf16.msra.mxu0 %v507
    %695 = vmatmul.bf16.gmra.mxu0 %v228
    %v696 = vpop.f32.mrf.mxu0
    %v697 = vadd.f32 %v299, %v696
    %v698 = vpop.f32.mrf.mxu0
    %v699 = vadd.f32 %v299, %v698
    %700 = vdwg.mxu0
    %701 = vmatpush.bf16.msra.mxu0 %v564
    %702 = vmatpush.bf16.msra.mxu0 %v556
    %703 = vmatpush.bf16.msra.mxu0 %v548
    %704 = vmatpush.bf16.msra.mxu0 %v540
    %705 = vmatpush.bf16.msra.mxu0 %v532
    %706 = vmatpush.bf16.msra.mxu0 %v524
    %707 = vmatpush.bf16.msra.mxu0 %v516
    %708 = vmatpush.bf16.msra.mxu0 %v508
    %709 = vmatmul.bf16.gmra.mxu0 %v228
    %v710 = vpop.f32.mrf.mxu0
    %v711 = vadd.f32 %v300, %v710
    %v712 = vpop.f32.mrf.mxu0
    %v713 = vadd.f32 %v300, %v712
    %714 = vdwg.mxu0
    %715 = vmatpush.bf16.msra.mxu0 %v565
    %716 = vmatpush.bf16.msra.mxu0 %v557
    %717 = vmatpush.bf16.msra.mxu0 %v549
    %718 = vmatpush.bf16.msra.mxu0 %v541
    %719 = vmatpush.bf16.msra.mxu0 %v533
    %720 = vmatpush.bf16.msra.mxu0 %v525
    %721 = vmatpush.bf16.msra.mxu0 %v517
    %722 = vmatpush.bf16.msra.mxu0 %v509
    %723 = vmatmul.bf16.gmra.mxu0 %v228
    %v724 = vpop.f32.mrf.mxu0
    %v725 = vadd.f32 %v301, %v724
    %v726 = vpop.f32.mrf.mxu0
    %v727 = vadd.f32 %v301, %v726
    %728 = vdwg.mxu0
    %729 = vmatpush.bf16.msra.mxu0 %v566
    %730 = vmatpush.bf16.msra.mxu0 %v558
    %731 = vmatpush.bf16.msra.mxu0 %v550
    %732 = vmatpush.bf16.msra.mxu0 %v542
    %733 = vmatpush.bf16.msra.mxu0 %v534
    %734 = vmatpush.bf16.msra.mxu0 %v526
    %735 = vmatpush.bf16.msra.mxu0 %v518
    %736 = vmatpush.bf16.msra.mxu0 %v510
    %737 = vmatmul.bf16.gmra.mxu0 %v228
    %v738 = vpop.f32.mrf.mxu0
    %v739 = vadd.f32 %v302, %v738
    %v740 = vpop.f32.mrf.mxu0
    %v741 = vadd.f32 %v302, %v740
    %742 = vdwg.mxu0
    %v743 = vpack.c.bf16 %v655, %v641
    %v744 = vpack.c.bf16 %v683, %v669
    %v745 = vpack.c.bf16 %v711, %v697
    %v746 = vpack.c.bf16 %v739, %v725
    %v747 = vpack.c.bf16 %v657, %v643
    %v748 = vpack.c.bf16 %v685, %v671
    %v749 = vpack.c.bf16 %v713, %v699
    %v750 = vpack.c.bf16 %v741, %v727
    %751 = vst [vmem:[#allocation11] sm:$0xff] %v743
    %752 = vst [vmem:[#allocation11 + $0x8] sm:$0xff] %v744
    %753 = vst [vmem:[#allocation11 + $0x10] sm:$0xff] %v745
    %754 = vst [vmem:[#allocation11 + $0x18] sm:$0xff] %v746
    %755 = vst [vmem:[#allocation11 + $0x20] sm:$0xff] %v747
    %756 = vst [vmem:[#allocation11 + $0x28] sm:$0xff] %v748
    %757 = vst [vmem:[#allocation11 + $0x30] sm:$0xff] %v749
    %758 = vst [vmem:[#allocation11 + $0x38] sm:$0xff] %v750
    // Predicated region
    $region50: #{tpu_custom_call.1} parent=1 // pred_check
      _
    $region51: #{tpu_custom_call.1} parent=1 // pred_check_branch
      %760 = sbr.rel (0) target = $region53
    $region52: #{tpu_custom_call.1} parent=1 // pred_region
      %762 = vsyncadd [#allocation4], 0
      %s763 = sshll.u32 [#allocation11], 4
      %s764 = int_to_ptr.vmem [resolvable:$true] %s763
      %s765 = sshll.u32 %s7, 4
      %s766 = int_to_ptr.hbm [resolvable:$true] %s765
      %771 = dma.vmem_to_hbm [thread:$0]  %s764, 1024, %s766, [#allocation4], 512, 512, 32
    $region53: #{tpu_custom_call.1} parent=1 // pred_fallthru
      _
    // Predicated region
    $region54: #{tpu_custom_call.1} parent=1 // pred_check
      _
    $region55: #{tpu_custom_call.1} parent=1 // pred_check_branch
      %773 = sbr.rel (0) target = $region57
    $region56: #{tpu_custom_call.1} parent=1 // pred_region
      %775 = dma.done [#allocation4], 1024
    $region57: #{tpu_custom_call.1} parent=1 // pred_fallthru
      _
    %776 = vsyncpa [#allocation3], 1
    %777 = vsyncpa [#allocation6], 1
    %778 = vsyncpa [#allocation9], 1
    %779 = vsyncpa [#allocation4], 1

</llo_original>
